<compile_context>
chip_gen: v7x
topology: tpu7x:2x2x1
jax: 0.10.0
libtpu: 0.0.40
codegen_flags: <defaults>
</compile_context>

<pallas_src>
import jax
import jax.numpy as jnp
from jax.experimental import pallas as pl
from jax.experimental.pallas import tpu as pltpu

TARGET_X = 1.0


def _objective_mean_kernel(pen_ref, x_ref, o_ref):
    """pen_ref: (K,) f32 SMEM; x_ref: (1, N) f32 VMEM; o_ref: (K, 1) f32 SMEM.

    out[k] = mean((x-2)^2) + penalty[k] * mean(log(TARGET_X - x))
           = mean((x-2)^2 + penalty[k] * log(TARGET_X - x))
    Penalty is linear in the objective, so the two vector reductions are done
    once and each penalty costs one scalar FMA + scalar SMEM store.
    """
    x = x_ref[...]                                         # (1, N) f32 vreg
    inv_n = 1.0 / float(x.shape[0] * x.shape[1])           # full-extent block -> exact
    sq_mean = jnp.sum((x - 2.0) ** 2) * inv_n              # VPU reduce
    log_mean = jnp.sum(jnp.log(TARGET_X - x)) * inv_n      # EUP (log) + VPU reduce
    # TODO(synk): per review, confirm via pl.lower_as_mlir that the vector
    # reduce -> scalar SMEM store avoids a VMEM round-trip; the alternative is
    # a (K,1) VMEM output with a single masked vst.
    for k in range(o_ref.shape[0]):                        # K is static & tiny
        o_ref[k, 0] = sq_mean + pen_ref[k] * log_mean


def _call(x2d: jax.Array, penalties: jax.Array) -> jax.Array:
    k = penalties.shape[0]
    return pl.pallas_call(
        _objective_mean_kernel,
        out_shape=jax.ShapeDtypeStruct((k, 1), jnp.float32),
        # No grid: whole (tiny) arrays are resident for a single invocation.
        in_specs=[
            pl.BlockSpec(memory_space=pltpu.MemorySpace.SMEM),   # penalties
            pl.BlockSpec(memory_space=pltpu.MemorySpace.VMEM),   # x
        ],
        out_specs=pl.BlockSpec(memory_space=pltpu.MemorySpace.SMEM),
    )(penalties, x2d)


def _prep_param(param: jax.Array) -> jax.Array:
    if param.dtype != jnp.float32:       # skip no-op casts in the wrapper HLO
        param = param.astype(jnp.float32)
    return param.reshape(1, param.shape[0])   # lane axis last


def constrained_objective_mean(param: jax.Array, penalty) -> jax.Array:
    """Model.forward(): param (N,) f32, penalty scalar -> scalar mean objective."""
    pen = jnp.asarray(penalty, dtype=jnp.float32).reshape(1)
    out = _call(_prep_param(param), pen)
    return out[0, 0]


def constrained_objective_mean_batched(param: jax.Array, penalties) -> jax.Array:
    """Same forward evaluated for K penalties in ONE pallas_call; returns (K,)."""
    pen = jnp.asarray(penalties, dtype=jnp.float32).reshape(-1)
    out = _call(_prep_param(param), pen)
    return out[:, 0]


if __name__ == "__main__":
    key = jax.random.PRNGKey(0)
    # nn.Parameter(torch.zeros((16,))) would make the log term exactly 0; draw
    # small values in (-0.5, 0.5) to exercise the full expression while keeping
    # log(1 - x) well defined.
    param = jax.random.uniform(key, (16,), minval=-0.5, maxval=0.5,
                               dtype=jnp.float32)

    fwd = jax.jit(constrained_objective_mean)
    fwd_batched = jax.jit(constrained_objective_mean_batched)

    def ref(p, pen):
        return jnp.mean((p - 2.0) ** 2 + pen * jnp.log(TARGET_X - p))

    # Single-penalty forward — exact semantics of Model.forward().
    res = jax.block_until_ready(fwd(param, 0.1))
    assert jnp.allclose(res, ref(param, 0.1), rtol=1e-5, atol=1e-5), (res, ref(param, 0.1))

    # Whole annealing schedule of penalties in ONE kernel dispatch.
    penalties = jnp.array([0.1, 0.5, 1.0, 2.0], dtype=jnp.float32)
    res_b = jax.block_until_ready(fwd_batched(param, penalties))
    ref_b = jnp.stack([ref(param, p) for p in penalties])
    assert jnp.allclose(res_b, ref_b, rtol=1e-5, atol=1e-5), (res_b, ref_b)

    # Module's actual init (zeros): mean((0-2)^2 + p*log(1)) = 4.0 exactly.
    zeros_result = jax.block_until_ready(fwd(jnp.zeros((16,), jnp.float32), 0.1))
    assert jnp.allclose(zeros_result, 4.0, rtol=1e-6, atol=1e-6), zeros_result

    print("KERNEL_OK")
</pallas_src>

<mosaic_0001>
module attributes {stable_mosaic.version = 11 : i64} {
  func.func @_objective_mean_kernel(%arg0: memref<1xf32, #tpu.memory_space<smem>>, %arg1: memref<1x16xf32, #tpu.memory_space<vmem>>, %arg2: memref<1x1xf32, #tpu.memory_space<smem>>) attributes {dimension_semantics = [], scalar_prefetch = 0 : i64, scratch_operands = 0 : i64, tpu.core_type = #tpu.core_type<tc>} {
    %c0 = arith.constant 0 : index
    %c0_0 = arith.constant 0 : index
    %0 = vector.load %arg1[%c0, %c0_0] : memref<1x16xf32, #tpu.memory_space<vmem>>, vector<1x16xf32>
    %cst = arith.constant 2.000000e+00 : f32
    %1 = vector.broadcast %cst : f32 to vector<1x16xf32>
    %2 = arith.subf %0, %1 : vector<1x16xf32>
    %3 = arith.mulf %2, %2 : vector<1x16xf32>
    %4 = vector.shape_cast %3 : vector<1x16xf32> to vector<1x1x16xf32>
    %cst_1 = arith.constant dense<0.000000e+00> : vector<1xf32>
    %5 = vector.multi_reduction <add>, %4, %cst_1 [1, 2] : vector<1x1x16xf32> to vector<1xf32>
    %6 = vector.shape_cast %5 : vector<1xf32> to vector<1x1x1xf32>
    %7 = vector.extract %6[0, 0, 0] : f32 from vector<1x1x1xf32>
    %cst_2 = arith.constant 6.250000e-02 : f32
    %8 = arith.mulf %7, %cst_2 : f32
    %cst_3 = arith.constant 1.000000e+00 : f32
    %9 = vector.broadcast %cst_3 : f32 to vector<1x16xf32>
    %10 = arith.subf %9, %0 : vector<1x16xf32>
    %11 = math.log %10 : vector<1x16xf32>
    %12 = vector.shape_cast %11 : vector<1x16xf32> to vector<1x1x16xf32>
    %cst_4 = arith.constant dense<0.000000e+00> : vector<1xf32>
    %13 = vector.multi_reduction <add>, %12, %cst_4 [1, 2] : vector<1x1x16xf32> to vector<1xf32>
    %14 = vector.shape_cast %13 : vector<1xf32> to vector<1x1x1xf32>
    %15 = vector.extract %14[0, 0, 0] : f32 from vector<1x1x1xf32>
    %cst_5 = arith.constant 6.250000e-02 : f32
    %16 = arith.mulf %15, %cst_5 : f32
    %c0_6 = arith.constant 0 : index
    %17 = memref.load %arg0[%c0_6] : memref<1xf32, #tpu.memory_space<smem>>
    %18 = arith.mulf %17, %16 : f32
    %19 = arith.addf %8, %18 : f32
    %c0_7 = arith.constant 0 : index
    %c0_8 = arith.constant 0 : index
    %20 = memref.load %arg2[%c0_7, %c0_8] : memref<1x1xf32, #tpu.memory_space<smem>>
    memref.store %19, %arg2[%c0_7, %c0_8] : memref<1x1xf32, #tpu.memory_space<smem>>
    return
  }
}

</mosaic_0001>

<llo_original>
// kernel: constrained_objective_mean.1
$region0: #{constrained_objective_mean.1}
  #allocation0 [shape = 'u32[]', space=smem, size = 0x4, offset = 0x4, fixed_abs, tag = 'smem constant byte address 0x4 - core index']
  #allocation1 [shape = 'u32[144,128]{1,0:T(1,128)}', space=vmem, size = 0x12000, scoped, tag = 'internal scratch']
  #allocation2 [shape = 'f32[1]{0:T(128)S(6)}', space=smem, size = 0x200, scoped, tag = 'scoped memory for constrained_objective_mean.1']
  %s0 = inlined_call_operand.<no memory space> [shape: f32[1], index: 0, kind: input, shape index: {}]
  %s1 = inlined_call_operand.vmem [shape: f32[1,16], index: 1, kind: input, shape index: {}]
  %s2 = inlined_call_operand.hbm [shape: f32[1,1], index: 2, kind: output, shape index: {}]
  %s3 = sld [smem:[#allocation0]]
  $region18: #{constrained_objective_mean.1} parent=0
    _
  %s5 = ssub.s32 1, %s3
  %s6 = scalar_select 0, %s5, %s3
  %7 = sst [smem:[#allocation2]] %s0
  $region1: #{constrained_objective_mean.1} parent=0
    #allocation3 [shape = 'u8[512]{0}', space=smem, size = 0x200, scoped, tag = 'output window, operand 0, single buffered']
    #allocation4 [shape = 's32[1]{0}', space=sflag, size = 0x4, scoped, tag = 'scoped memory for constrained_objective_mean.1']
    %8 = vsyncpa [#allocation4], 0
    // Predicated region
    $region2: #{constrained_objective_mean.1} parent=1 // pred_check
      _
    $region3: #{constrained_objective_mean.1} parent=1 // pred_check_branch
      %10 = sbr.rel (0) target = $region5
    $region4: #{constrained_objective_mean.1} parent=1 // pred_region
      _
    $region5: #{constrained_objective_mean.1} parent=1 // pred_fallthru
      _
    // Predicated region
    $region6: #{constrained_objective_mean.1} parent=1 // pred_check
      _
    $region7: #{constrained_objective_mean.1} parent=1 // pred_check_branch
      %12 = sbr.rel (0) target = $region9
    $region8: #{constrained_objective_mean.1} parent=1 // pred_region
      _
    $region9: #{constrained_objective_mean.1} parent=1 // pred_fallthru
      _
    %v13 = vld [vmem:[%s1] sm:$0x1]
    %v14 = vsub.f32 %v13, 2.0
    %v15 = vmul.f32 %v14, %v14
    %vm16 = vcmask 122880
    %v17 = vsel %vm16, %v15, 0.0
    %18 = vadd.xlane.f32.xlu0 %v17
    %v19 = vpop.xlane.xlu0 %18
    %v20 = vrot.slane %v19, 4
    %v21 = vadd.f32 %v19, %v20
    %v22 = vrot.slane %v21, 2
    %v23 = vadd.f32 %v21, %v22
    %v24 = vrot.slane %v23, 1
    %v25 = vadd.f32 %v23, %v24
    %s26 = vtos %v25
    %s27 = smul.f32 %s26, 0.0625
    %v28 = vsub.f32 1.0, %v13
    %v29 = vlog2.pop %v28
    %v30 = vmul.f32 %v29, 0.6931472
    %v31 = vsel %vm16, %v30, 0.0
    %32 = vadd.xlane.f32.xlu0 %v31
    %v33 = vpop.xlane.xlu0 %32
    %v34 = vrot.slane %v33, 4
    %v35 = vadd.f32 %v33, %v34
    %v36 = vrot.slane %v35, 2
    %v37 = vadd.f32 %v35, %v36
    %v38 = vrot.slane %v37, 1
    %v39 = vadd.f32 %v37, %v38
    %s40 = vtos %v39
    %s41 = smul.f32 %s40, 0.0625
    %s42 = sld [smem:[#allocation2]]
    %s43 = smul.f32 %s42, %s41
    %s44 = sadd.f32 %s27, %s43
    %s45 = scalar_lea.smem [#allocation3], 0
    %46 = sst [smem:[%s45]] %s44
    // Predicated region
    $region10: #{constrained_objective_mean.1} parent=1 // pred_check
      _
    $region11: #{constrained_objective_mean.1} parent=1 // pred_check_branch
      %48 = sbr.rel (0) target = $region13
    $region12: #{constrained_objective_mean.1} parent=1 // pred_region
      %s50 = ssub.s32 16, 16
      %51 = vsyncadd [#allocation4], %s50
      %54 = dma.smem_to_hbm [#allocation3], 16, %s2, [#allocation4]
    $region13: #{constrained_objective_mean.1} parent=1 // pred_fallthru
      _
    // Predicated region
    $region14: #{constrained_objective_mean.1} parent=1 // pred_check
      _
    $region15: #{constrained_objective_mean.1} parent=1 // pred_check_branch
      %56 = sbr.rel (0) target = $region17
    $region16: #{constrained_objective_mean.1} parent=1 // pred_region
      %57 = dma.done [#allocation4], 16
    $region17: #{constrained_objective_mean.1} parent=1 // pred_fallthru
      _
    %58 = sfence
    %59 = vsyncpa [#allocation4], 1

</llo_original>
